<compile_context>
chip_gen: v6e
topology: v6e:2x2x1
jax: 0.10.0
libtpu: 0.0.40
codegen_flags: <defaults>
</compile_context>

<pallas_src>
import functools

import jax
import jax.numpy as jnp
from jax import lax
from jax.experimental import pallas as pl
from jax.experimental.pallas import tpu as pltpu

MARGIN = 0.2


def _hinge_kernel(eeg_ref, img_ref, labc_ref, labr_ref,
                  hinge_ref, corr_ref, colmax_ref, *, batch, tile_m, margin):
    """One eeg row tile vs. the full (VMEM-resident) img embedding table."""
    i = pl.program_id(0)                       # eeg row-tile index
    neg_inf = jnp.float32(-jnp.inf)
    marg = jnp.float32(margin)

    eeg = eeg_ref[...]                         # (tile_m, D)
    img = img_ref[...]                         # (b_pad, D), VMEM resident
    b_pad = img.shape[0]

    # compat[r, c] = <eeg_r, img_c>: contract dim 1 of both operands (A.B^T
    # with no materialised transpose), f32 accumulation on the MXU.
    compat = lax.dot_general(eeg, img, (((1,), (1,)), ((), ())),
                             preferred_element_type=jnp.float32)   # (tile_m, b_pad)

    rows = i * tile_m + lax.broadcasted_iota(jnp.int32, (tile_m, 1), 0)
    cols = lax.broadcasted_iota(jnp.int32, (1, b_pad), 1)

    # Diagonal ("correct") scores straight off the compat slab, so they are
    # numerically consistent with the imposter scores (both MXU results).
    diag_vals = jnp.where(rows == cols, compat, 0.0)
    corr_col = jnp.sum(diag_vals, axis=1, keepdims=True)           # (tile_m, 1)
    # (1, b_pad); nonzero only on this tile's diagonal slice (summed in wrapper).
    corr_row = jnp.sum(diag_vals, axis=0, keepdims=True)

    # Imposter mask: labels differ.  If the batch was padded, padded rows/cols
    # (padding label 0 collides with real label 0) must never win a max.
    keep = labc_ref[...] != labr_ref[...]                          # (tile_m, b_pad)
    if b_pad != batch:
        keep = keep & (rows < batch) & (cols < batch)
    masked = jnp.where(keep, compat, neg_inf)

    row_max = jnp.max(masked, axis=1, keepdims=True)   # hardest imposter per eeg row
    col_max = jnp.max(masked, axis=0, keepdims=True)   # per image, this tile's rows only

    # eeg -> img hinge, one value per row (padded / imposter-free rows give
    # relu(-inf) = 0, matching the reference semantics).
    hinge_ref[...] = jnp.maximum(marg + row_max - corr_col, 0.0)
    # Lane-dense per-tile partials; sublane-broadcast keeps the store unmasked.
    corr_ref[...] = jnp.broadcast_to(corr_row, corr_ref.shape)
    colmax_ref[...] = jnp.broadcast_to(col_max, colmax_ref.shape)


def _round_up(x, m):
    return -(-x // m) * m


def _vmem_capacity_bytes():
    try:
        return int(pltpu.get_tpu_info().vmem_capacity_bytes)
    except Exception:
        return 64 << 20                        # conservative: v7x per-TensorCore VMEM


def structured_hinge_loss(eeg_emb, img_emb, labels, *, margin=MARGIN,
                          compute_dtype=jnp.bfloat16, tile_m=None):
    """Pallas TPU implementation of StructuredHingeLoss.forward (margin=0.2).

    Embeddings are fed to the MXU in `compute_dtype` (bf16 by default); all
    post-matmul math, reductions and the loss itself stay in f32.
    """
    batch, dim = eeg_emb.shape
    assert img_emb.shape == (batch, dim)
    assert labels.shape == (batch,)

    # ---- tile / padding selection ----------------------------------------
    if tile_m is None:
        b128 = _round_up(batch, 128)
        if b128 <= 1024:
            tile_m = b128                      # small-batch fast path: 1 grid step
        else:
            # keep one (tile_m, b_pad) f32 compat slab around <= 4 MiB
            tile_m = ((4 << 20) // 4 // b128) // 128 * 128
            tile_m = max(128, min(512, tile_m))
    else:
        assert tile_m >= 128 and tile_m % 128 == 0
    b_pad = _round_up(batch, tile_m)
    n_tiles = b_pad // tile_m

    op_isz = jnp.dtype(compute_dtype).itemsize

    # ---- per-TensorCore VMEM budget (v7x: 64 MiB; v5e/v6e: 128 MiB) -------
    vmem_need = int(
        2 * tile_m * dim * op_isz              # eeg tile (double buffered)
        + 2 * b_pad * dim * op_isz             # resident img (conservative x2)
        + 2 * tile_m * 128 * 4                 # labels, column form (lane padded)
        + 2 * 8 * b_pad * 4                    # labels, row form (sublane padded)
        + 2 * tile_m * 128 * 4                 # hinge output block (lane padded)
        + 2 * 2 * 8 * b_pad * 4                # corr / colmax output blocks
        + 4 * tile_m * b_pad * 4               # compat slab + mask/max temporaries
        + (16 << 20))                          # compiler scratch headroom
    budget = min(_vmem_capacity_bytes() * 3 // 4, 100 << 20)
    if vmem_need > budget:
        # TODO(synk): add a streamed-img 2-D grid fallback (column tiles +
        # running col-max accumulators) for problems whose img embedding table
        # does not fit in VMEM.
        raise NotImplementedError(
            f"resident-img hinge kernel wants ~{vmem_need >> 20} MiB VMEM, "
            f"budget is {budget >> 20} MiB (batch={batch}, dim={dim})")
    vmem_limit = max(32 << 20, vmem_need)

    # ---- operands ---------------------------------------------------------
    eeg = eeg_emb.astype(compute_dtype)
    img = img_emb.astype(compute_dtype)
    if b_pad != batch:
        pad2 = ((0, b_pad - batch), (0, 0))
        eeg = jnp.pad(eeg, pad2)
        img = jnp.pad(img, pad2)
    lab = jnp.pad(labels.astype(jnp.int32), (0, b_pad - batch))
    lab_col = lab.reshape(b_pad, 1)
    lab_row = lab.reshape(1, b_pad)

    cost = pl.CostEstimate(
        flops=2 * b_pad * b_pad * dim,
        transcendentals=0,
        bytes_accessed=int(2 * b_pad * dim * op_isz + 2 * b_pad * 4
                           + (b_pad + 2 * 8 * n_tiles * b_pad) * 4))

    kernel = functools.partial(_hinge_kernel, batch=batch, tile_m=tile_m,
                               margin=margin)
    hinge_e, corr_parts, colmax_parts = pl.pallas_call(
        kernel,
        out_shape=[
            jax.ShapeDtypeStruct((b_pad, 1), jnp.float32),            # hinge_e per row
            jax.ShapeDtypeStruct((8 * n_tiles, b_pad), jnp.float32),  # diag partials
            jax.ShapeDtypeStruct((8 * n_tiles, b_pad), jnp.float32),  # col-max partials
        ],
        grid_spec=pltpu.PrefetchScalarGridSpec(
            num_scalar_prefetch=0,
            grid=(n_tiles,),
            in_specs=[
                pl.BlockSpec((tile_m, dim), lambda i: (i, 0)),   # eeg row tile
                pl.BlockSpec((b_pad, dim), lambda i: (0, 0)),    # img, VMEM resident
                pl.BlockSpec((tile_m, 1), lambda i: (i, 0)),     # labels (column form)
                pl.BlockSpec((1, b_pad), lambda i: (0, 0)),      # labels (row, resident)
            ],
            out_specs=[
                pl.BlockSpec((tile_m, 1), lambda i: (i, 0)),
                pl.BlockSpec((8, b_pad), lambda i: (i, 0)),
                pl.BlockSpec((8, b_pad), lambda i: (i, 0)),
            ]),
        compiler_params=pltpu.CompilerParams(
            dimension_semantics=("parallel",),        # megacore-shardable on v7x
            vmem_limit_bytes=int(vmem_limit)),
        cost_estimate=cost,
    )(eeg, img, lab_col, lab_row)

    # ---- tiny epilogue (O(batch) elementwise XLA ops) ----------------------
    corr = corr_parts.reshape(n_tiles, 8, b_pad)[:, 0, :].sum(axis=0)[:batch]
    col_max = colmax_parts.reshape(n_tiles, 8, b_pad)[:, 0, :].max(axis=0)[:batch]
    loss_e = jnp.mean(hinge_e[:batch, 0])
    loss_v = jnp.mean(jnp.maximum(jnp.float32(margin) + col_max - corr, 0.0))
    return (loss_e + loss_v) * jnp.float32(0.5)


def _reference(eeg_emb, img_emb, labels, margin=MARGIN):
    compat = jnp.matmul(eeg_emb, img_emb.T)
    correct = jnp.diag(compat)[:, None]
    mask = labels[:, None] != labels[None, :]
    neg_inf = jnp.float32(-jnp.inf)
    imp_e = jnp.max(jnp.where(mask, compat, neg_inf), axis=1, keepdims=True)
    imp_v = jnp.max(jnp.where(mask.T, compat.T, neg_inf), axis=1, keepdims=True)
    loss_e = jnp.mean(jnp.maximum(margin + imp_e - correct, 0.0))
    loss_v = jnp.mean(jnp.maximum(margin + imp_v - correct, 0.0))
    return (loss_e + loss_v) / 2


def _normalize(x):
    return x / jnp.linalg.norm(x, axis=1, keepdims=True)


if __name__ == "__main__":
    key = jax.random.PRNGKey(0)
    k1, k2, k3, k4, k5, k6 = jax.random.split(key, 6)
    # Loose enough to cover bf16 operands + reduced-precision f32 XLA matmul
    # in the reference on TPU.
    TOL = dict(atol=2e-2, rtol=2e-2)

    # Case 1: single-step fast path (small batch implied by the module).
    b1, d1 = 8, 32
    eeg1 = _normalize(jax.random.normal(k1, (b1, d1), dtype=jnp.float32))
    img1 = _normalize(jax.random.normal(k2, (b1, d1), dtype=jnp.float32))
    lab1 = jnp.arange(b1, dtype=jnp.int32) % 4   # repeated classes -> nontrivial mask
    loss1 = structured_hinge_loss(eeg1, img1, lab1)
    jax.block_until_ready(loss1)
    ref1 = _reference(eeg1, img1, lab1)
    assert jnp.allclose(loss1, ref1, **TOL), (loss1, ref1)

    # Case 2: single step with batch padding (200 -> 256).
    b2, d2 = 200, 64
    eeg2 = _normalize(jax.random.normal(k3, (b2, d2), dtype=jnp.float32))
    img2 = _normalize(jax.random.normal(k4, (b2, d2), dtype=jnp.float32))
    lab2 = jnp.arange(b2, dtype=jnp.int32) % 7
    loss2 = structured_hinge_loss(eeg2, img2, lab2)
    jax.block_until_ready(loss2)
    ref2 = _reference(eeg2, img2, lab2)
    assert jnp.allclose(loss2, ref2, **TOL), (loss2, ref2)

    # Case 3: force a multi-row-tile grid (exercises the parallel axis and the
    # partial diag / col-max outputs) while keeping shapes small.
    loss3 = structured_hinge_loss(eeg2, img2, lab2, tile_m=128)
    jax.block_until_ready(loss3)
    assert jnp.allclose(loss3, ref2, **TOL), (loss3, ref2)

    # Case 4: no valid imposters (all labels equal) -> loss must be exactly 0.
    b4, d4 = 16, 32
    eeg4 = _normalize(jax.random.normal(k5, (b4, d4), dtype=jnp.float32))
    img4 = _normalize(jax.random.normal(k6, (b4, d4), dtype=jnp.float32))
    lab4 = jnp.zeros((b4,), dtype=jnp.int32)
    loss4 = structured_hinge_loss(eeg4, img4, lab4)
    jax.block_until_ready(loss4)
    ref4 = _reference(eeg4, img4, lab4)
    assert jnp.allclose(loss4, ref4, **TOL), (loss4, ref4)

    print("KERNEL_OK")
</pallas_src>

<mosaic_0001>
module attributes {stable_mosaic.version = 11 : i64} {
  func.func @_hinge_kernel(%arg0: i32, %arg1: memref<128x32xbf16, #tpu.memory_space<vmem>>, %arg2: memref<128x32xbf16, #tpu.memory_space<vmem>>, %arg3: memref<128x1xi32, #tpu.memory_space<vmem>>, %arg4: memref<1x128xi32, #tpu.memory_space<vmem>>, %arg5: memref<128x1xf32, #tpu.memory_space<vmem>>, %arg6: memref<8x128xf32, #tpu.memory_space<vmem>>, %arg7: memref<8x128xf32, #tpu.memory_space<vmem>>) attributes {dimension_semantics = [#tpu.dimension_semantics<parallel>], iteration_bounds = array<i64: 1>, scalar_prefetch = 0 : i64, scratch_operands = 0 : i64, tpu.core_type = #tpu.core_type<tc>, window_params = [{transform_indices = @transform_0, window_bounds = array<i64: 128, 32>}, {pipeline_mode = #tpu.pipeline_mode<synchronous>, transform_indices = @transform_1, window_bounds = array<i64: 128, 32>}, {transform_indices = @transform_2, window_bounds = array<i64: 128, 1>}, {pipeline_mode = #tpu.pipeline_mode<synchronous>, transform_indices = @transform_3, window_bounds = array<i64: 1, 128>}, {transform_indices = @transform_4, window_bounds = array<i64: 128, 1>}, {transform_indices = @transform_5, window_bounds = array<i64: 8, 128>}, {transform_indices = @transform_6, window_bounds = array<i64: 8, 128>}]} {
    %c0 = arith.constant 0 : index
    %c0_0 = arith.constant 0 : index
    %0 = vector.load %arg1[%c0, %c0_0] : memref<128x32xbf16, #tpu.memory_space<vmem>>, vector<128x32xbf16>
    %c0_1 = arith.constant 0 : index
    %c0_2 = arith.constant 0 : index
    %1 = vector.load %arg2[%c0_1, %c0_2] : memref<128x32xbf16, #tpu.memory_space<vmem>>, vector<128x32xbf16>
    %cst = arith.constant dense<0.000000e+00> : vector<128x128xf32>
    %2 = tpu.matmul %0, %1, %cst {dimension_numbers = #tpu.dot_dimension_numbers<[1], [1], [0], [0], [0, 0, 1, 0], [], []>} : vector<128x32xbf16>, vector<128x32xbf16>, vector<128x128xf32> -> vector<128x128xf32>
    %c128_i32 = arith.constant 128 : i32
    %3 = arith.muli %arg0, %c128_i32 : i32
    %4 = tpu.iota {dimensions = array<i32: 0>} : vector<128x1xi32>
    %5 = vector.broadcast %3 : i32 to vector<128x1xi32>
    %6 = arith.addi %5, %4 : vector<128x1xi32>
    %7 = tpu.iota {dimensions = array<i32: 1>} : vector<1x128xi32>
    %8 = vector.broadcast %6 : vector<128x1xi32> to vector<128x128xi32>
    %9 = vector.broadcast %7 : vector<1x128xi32> to vector<128x128xi32>
    %10 = arith.cmpi eq, %8, %9 : vector<128x128xi32>
    %cst_3 = arith.constant 0.000000e+00 : f32
    %11 = vector.broadcast %cst_3 : f32 to vector<128x128xf32>
    %12 = arith.select %10, %2, %11 : vector<128x128xi1>, vector<128x128xf32>
    %cst_4 = arith.constant dense<0.000000e+00> : vector<128xf32>
    %13 = vector.multi_reduction <add>, %12, %cst_4 [1] : vector<128x128xf32> to vector<128xf32>
    %14 = vector.shape_cast %13 : vector<128xf32> to vector<128x1xf32>
    %cst_5 = arith.constant dense<0.000000e+00> : vector<128xf32>
    %15 = vector.multi_reduction <add>, %12, %cst_5 [0] : vector<128x128xf32> to vector<128xf32>
    %16 = vector.shape_cast %15 : vector<128xf32> to vector<1x128xf32>
    %c0_6 = arith.constant 0 : index
    %c0_7 = arith.constant 0 : index
    %17 = vector.load %arg3[%c0_6, %c0_7] : memref<128x1xi32, #tpu.memory_space<vmem>>, vector<128x1xi32>
    %c0_8 = arith.constant 0 : index
    %c0_9 = arith.constant 0 : index
    %18 = vector.load %arg4[%c0_8, %c0_9] : memref<1x128xi32, #tpu.memory_space<vmem>>, vector<1x128xi32>
    %19 = vector.broadcast %17 : vector<128x1xi32> to vector<128x128xi32>
    %20 = vector.broadcast %18 : vector<1x128xi32> to vector<128x128xi32>
    %21 = arith.cmpi ne, %19, %20 : vector<128x128xi32>
    %c8_i32 = arith.constant 8 : i32
    %22 = vector.broadcast %c8_i32 : i32 to vector<128x1xi32>
    %23 = arith.cmpi slt, %6, %22 : vector<128x1xi32>
    %24 = vector.broadcast %23 : vector<128x1xi1> to vector<128x128xi1>
    %25 = arith.andi %21, %24 : vector<128x128xi1>
    %c8_i32_10 = arith.constant 8 : i32
    %26 = vector.broadcast %c8_i32_10 : i32 to vector<1x128xi32>
    %27 = arith.cmpi slt, %7, %26 : vector<1x128xi32>
    %28 = vector.broadcast %27 : vector<1x128xi1> to vector<128x128xi1>
    %29 = arith.andi %25, %28 : vector<128x128xi1>
    %cst_11 = arith.constant 0xFF800000 : f32
    %30 = vector.broadcast %cst_11 : f32 to vector<128x128xf32>
    %31 = arith.select %29, %2, %30 : vector<128x128xi1>, vector<128x128xf32>
    %cst_12 = arith.constant dense<0xFF800000> : vector<128xf32>
    %32 = vector.multi_reduction <maximumf>, %31, %cst_12 [1] : vector<128x128xf32> to vector<128xf32>
    %33 = vector.shape_cast %32 : vector<128xf32> to vector<128x1xf32>
    %cst_13 = arith.constant dense<0xFF800000> : vector<128xf32>
    %34 = vector.multi_reduction <maximumf>, %31, %cst_13 [0] : vector<128x128xf32> to vector<128xf32>
    %35 = vector.shape_cast %34 : vector<128xf32> to vector<1x128xf32>
    %cst_14 = arith.constant 2.000000e-01 : f32
    %36 = vector.broadcast %cst_14 : f32 to vector<128x1xf32>
    %37 = arith.addf %36, %33 : vector<128x1xf32>
    %38 = arith.subf %37, %14 : vector<128x1xf32>
    %cst_15 = arith.constant 0.000000e+00 : f32
    %39 = vector.broadcast %cst_15 : f32 to vector<128x1xf32>
    %40 = arith.maximumf %38, %39 : vector<128x1xf32>
    %c0_16 = arith.constant 0 : index
    %c0_17 = arith.constant 0 : index
    %41 = vector.load %arg5[%c0_16, %c0_17] : memref<128x1xf32, #tpu.memory_space<vmem>>, vector<128x1xf32>
    tpu.vector_store %arg5[%c0_16, %c0_17], %40 {strides = array<i32>} : memref<128x1xf32, #tpu.memory_space<vmem>>, vector<128x1xf32>,
    %42 = vector.shape_cast %16 : vector<1x128xf32> to vector<1x128xf32>
    %43 = vector.broadcast %42 : vector<1x128xf32> to vector<8x128xf32>
    %c0_18 = arith.constant 0 : index
    %c0_19 = arith.constant 0 : index
    %44 = vector.load %arg6[%c0_18, %c0_19] : memref<8x128xf32, #tpu.memory_space<vmem>>, vector<8x128xf32>
    tpu.vector_store %arg6[%c0_18, %c0_19], %43 {strides = array<i32>} : memref<8x128xf32, #tpu.memory_space<vmem>>, vector<8x128xf32>,
    %45 = vector.shape_cast %35 : vector<1x128xf32> to vector<1x128xf32>
    %46 = vector.broadcast %45 : vector<1x128xf32> to vector<8x128xf32>
    %c0_20 = arith.constant 0 : index
    %c0_21 = arith.constant 0 : index
    %47 = vector.load %arg7[%c0_20, %c0_21] : memref<8x128xf32, #tpu.memory_space<vmem>>, vector<8x128xf32>
    tpu.vector_store %arg7[%c0_20, %c0_21], %46 {strides = array<i32>} : memref<8x128xf32, #tpu.memory_space<vmem>>, vector<8x128xf32>,
    return
  }
  func.func @transform_0(%arg0: i32) -> (i32, i32) {
    %c0_i32 = arith.constant 0 : i32
    %c0_i32_0 = arith.constant 0 : i32
    return %arg0, %c0_i32 : i32, i32
  }
  func.func @transform_1(%arg0: i32) -> (i32, i32) {
    %c0_i32 = arith.constant 0 : i32
    %c0_i32_0 = arith.constant 0 : i32
    %c0_i32_1 = arith.constant 0 : i32
    return %c0_i32, %c0_i32_0 : i32, i32
  }
  func.func @transform_2(%arg0: i32) -> (i32, i32) {
    %c0_i32 = arith.constant 0 : i32
    %c0_i32_0 = arith.constant 0 : i32
    return %arg0, %c0_i32 : i32, i32
  }
  func.func @transform_3(%arg0: i32) -> (i32, i32) {
    %c0_i32 = arith.constant 0 : i32
    %c0_i32_0 = arith.constant 0 : i32
    %c0_i32_1 = arith.constant 0 : i32
    return %c0_i32, %c0_i32_0 : i32, i32
  }
  func.func @transform_4(%arg0: i32) -> (i32, i32) {
    %c0_i32 = arith.constant 0 : i32
    %c0_i32_0 = arith.constant 0 : i32
    return %arg0, %c0_i32 : i32, i32
  }
  func.func @transform_5(%arg0: i32) -> (i32, i32) {
    %c0_i32 = arith.constant 0 : i32
    %c0_i32_0 = arith.constant 0 : i32
    return %arg0, %c0_i32 : i32, i32
  }
  func.func @transform_6(%arg0: i32) -> (i32, i32) {
    %c0_i32 = arith.constant 0 : i32
    %c0_i32_0 = arith.constant 0 : i32
    return %arg0, %c0_i32 : i32, i32
  }
}

</mosaic_0001>

<llo_original>
// kernel: tpu_custom_call.1
$region0: #{tpu_custom_call.1}
  #allocation0 [shape = 'u32[]', space=smem, size = 0x4, offset = 0x4, fixed_abs, tag = 'smem constant byte address 0x4 - core index']
  #allocation1 [shape = 'u32[144,128]{1,0:T(1,128)}', space=vmem, size = 0x12000, scoped, tag = 'internal scratch']
  %s0 = inlined_call_operand.vmem [shape: bf16[128,32], index: 0, kind: input, shape index: {}]
  %s1 = inlined_call_operand.vmem [shape: bf16[128,32], index: 1, kind: input, shape index: {}]
  %s2 = inlined_call_operand.vmem [shape: s32[128,1], index: 2, kind: input, shape index: {}]
  %s3 = inlined_call_operand.vmem [shape: s32[1,128], index: 3, kind: input, shape index: {}]
  %s4 = inlined_call_operand.vmem [shape: f32[128,1], index: 4, kind: output, shape index: {0}]
  %s5 = inlined_call_operand.hbm [shape: f32[8,128], index: 5, kind: output, shape index: {1}]
  %s6 = inlined_call_operand.hbm [shape: f32[8,128], index: 6, kind: output, shape index: {2}]
  %7 = xla_tuple %s4, %s5, %s6
  %s8 = sld [smem:[#allocation0]]
  $region42: #{tpu_custom_call.1} parent=0
    _
  %s10 = ssub.s32 1, %s8
  %s11 = scalar_select 0, %s10, %s8
  $region1: #{tpu_custom_call.1} parent=0
    #allocation2 [shape = 'u8[4096]{0}', space=vmem, size = 0x1000, scoped, tag = 'output window, operand 1, single buffered']
    #allocation3 [shape = 's32[1]{0}', space=sflag, size = 0x4, scoped, tag = 'scoped memory for tpu_custom_call.1']
    #allocation4 [shape = 'u8[4096]{0}', space=vmem, size = 0x1000, scoped, tag = 'output window, operand 2, single buffered']
    #allocation5 [shape = 's32[1]{0}', space=sflag, size = 0x4, scoped, tag = 'scoped memory for tpu_custom_call.1']
    %12 = vsyncpa [#allocation3], 0
    %13 = vsyncpa [#allocation5], 0
    // Predicated region
    $region2: #{tpu_custom_call.1} parent=1 // pred_check
      _
    $region3: #{tpu_custom_call.1} parent=1 // pred_check_branch
      %15 = sbr.rel (0) target = $region5
    $region4: #{tpu_custom_call.1} parent=1 // pred_region
      _
    $region5: #{tpu_custom_call.1} parent=1 // pred_fallthru
      _
    // Predicated region
    $region6: #{tpu_custom_call.1} parent=1 // pred_check
      _
    $region7: #{tpu_custom_call.1} parent=1 // pred_check_branch
      %17 = sbr.rel (0) target = $region9
    $region8: #{tpu_custom_call.1} parent=1 // pred_region
      _
    $region9: #{tpu_custom_call.1} parent=1 // pred_fallthru
      _
    // Predicated region
    $region10: #{tpu_custom_call.1} parent=1 // pred_check
      _
    $region11: #{tpu_custom_call.1} parent=1 // pred_check_branch
      %19 = sbr.rel (0) target = $region13
    $region12: #{tpu_custom_call.1} parent=1 // pred_region
      _
    $region13: #{tpu_custom_call.1} parent=1 // pred_fallthru
      _
    // Predicated region
    $region14: #{tpu_custom_call.1} parent=1 // pred_check
      _
    $region15: #{tpu_custom_call.1} parent=1 // pred_check_branch
      %21 = sbr.rel (0) target = $region17
    $region16: #{tpu_custom_call.1} parent=1 // pred_region
      _
    $region17: #{tpu_custom_call.1} parent=1 // pred_fallthru
      _
    %v23 = vld [vmem:[%s0] sm:$0xf]
    %v24 = vld [vmem:[%s0 + $0x4] sm:$0xf]
    %v25 = vld [vmem:[%s0 + $0x8] sm:$0xf]
    %v26 = vld [vmem:[%s0 + $0xc] sm:$0xf]
    %v27 = vld [vmem:[%s0 + $0x10] sm:$0xf]
    %v28 = vld [vmem:[%s0 + $0x14] sm:$0xf]
    %v29 = vld [vmem:[%s0 + $0x18] sm:$0xf]
    %v30 = vld [vmem:[%s0 + $0x1c] sm:$0xf]
    %v31 = vld [vmem:[%s0 + $0x20] sm:$0xf]
    %v32 = vld [vmem:[%s0 + $0x24] sm:$0xf]
    %v33 = vld [vmem:[%s0 + $0x28] sm:$0xf]
    %v34 = vld [vmem:[%s0 + $0x2c] sm:$0xf]
    %v35 = vld [vmem:[%s0 + $0x30] sm:$0xf]
    %v36 = vld [vmem:[%s0 + $0x34] sm:$0xf]
    %v37 = vld [vmem:[%s0 + $0x38] sm:$0xf]
    %v38 = vld [vmem:[%s0 + $0x3c] sm:$0xf]
    %v39 = vld [vmem:[%s1] sm:$0xf]
    %v40 = vld [vmem:[%s1 + $0x4] sm:$0xf]
    %v41 = vld [vmem:[%s1 + $0x8] sm:$0xf]
    %v42 = vld [vmem:[%s1 + $0xc] sm:$0xf]
    %v43 = vld [vmem:[%s1 + $0x10] sm:$0xf]
    %v44 = vld [vmem:[%s1 + $0x14] sm:$0xf]
    %v45 = vld [vmem:[%s1 + $0x18] sm:$0xf]
    %v46 = vld [vmem:[%s1 + $0x1c] sm:$0xf]
    %v47 = vld [vmem:[%s1 + $0x20] sm:$0xf]
    %v48 = vld [vmem:[%s1 + $0x24] sm:$0xf]
    %v49 = vld [vmem:[%s1 + $0x28] sm:$0xf]
    %v50 = vld [vmem:[%s1 + $0x2c] sm:$0xf]
    %v51 = vld [vmem:[%s1 + $0x30] sm:$0xf]
    %v52 = vld [vmem:[%s1 + $0x34] sm:$0xf]
    %v53 = vld [vmem:[%s1 + $0x38] sm:$0xf]
    %v54 = vld [vmem:[%s1 + $0x3c] sm:$0xf]
    %v71 = vunpack.c.l.b16 %v23
    %v72 = vunpack.c.l.b16 %v24
    %v73 = vunpack.c.l.b16 %v25
    %v74 = vunpack.c.l.b16 %v26
    %v75 = vunpack.c.l.b16 %v27
    %v76 = vunpack.c.l.b16 %v28
    %v77 = vunpack.c.l.b16 %v29
    %v78 = vunpack.c.l.b16 %v30
    %v79 = vunpack.c.l.b16 %v31
    %v80 = vunpack.c.l.b16 %v32
    %v81 = vunpack.c.l.b16 %v33
    %v82 = vunpack.c.l.b16 %v34
    %v83 = vunpack.c.l.b16 %v35
    %v84 = vunpack.c.l.b16 %v36
    %v85 = vunpack.c.l.b16 %v37
    %v86 = vunpack.c.l.b16 %v38
    %v87 = vpack.c.b16 %v72, %v71
    %v88 = vpack.c.b16 %v74, %v73
    %v89 = vpack.c.b16 %v76, %v75
    %v90 = vpack.c.b16 %v78, %v77
    %v91 = vpack.c.b16 %v80, %v79
    %v92 = vpack.c.b16 %v82, %v81
    %v93 = vpack.c.b16 %v84, %v83
    %v94 = vpack.c.b16 %v86, %v85
    %v111 = vunpack.c.l.b16 %v39
    %v112 = vunpack.c.l.b16 %v40
    %v113 = vunpack.c.l.b16 %v41
    %v114 = vunpack.c.l.b16 %v42
    %v115 = vunpack.c.l.b16 %v43
    %v116 = vunpack.c.l.b16 %v44
    %v117 = vunpack.c.l.b16 %v45
    %v118 = vunpack.c.l.b16 %v46
    %v119 = vunpack.c.l.b16 %v47
    %v120 = vunpack.c.l.b16 %v48
    %v121 = vunpack.c.l.b16 %v49
    %v122 = vunpack.c.l.b16 %v50
    %v123 = vunpack.c.l.b16 %v51
    %v124 = vunpack.c.l.b16 %v52
    %v125 = vunpack.c.l.b16 %v53
    %v126 = vunpack.c.l.b16 %v54
    %v127 = vpack.c.b16 %v112, %v111
    %v128 = vpack.c.b16 %v114, %v113
    %v129 = vpack.c.b16 %v116, %v115
    %v130 = vpack.c.b16 %v118, %v117
    %v131 = vpack.c.b16 %v120, %v119
    %v132 = vpack.c.b16 %v122, %v121
    %v133 = vpack.c.b16 %v124, %v123
    %v134 = vpack.c.b16 %v126, %v125
    %vm135 = vcmask 261120
    %v137 = vsel %vm135, %v87, 0
    %v140 = vsel %vm135, %v88, 0
    %v143 = vsel %vm135, %v89, 0
    %v146 = vsel %vm135, %v90, 0
    %v149 = vsel %vm135, %v91, 0
    %v152 = vsel %vm135, %v92, 0
    %v155 = vsel %vm135, %v93, 0
    %v158 = vsel %vm135, %v94, 0
    %v161 = vsel %vm135, %v127, 0
    %v164 = vsel %vm135, %v128, 0
    %v167 = vsel %vm135, %v129, 0
    %v170 = vsel %vm135, %v130, 0
    %v173 = vsel %vm135, %v131, 0
    %v176 = vsel %vm135, %v132, 0
    %v179 = vsel %vm135, %v133, 0
    %v182 = vsel %vm135, %v134, 0
    %184 = vmatprep.subr.bf16.mxu0 0
    %185 = vmatpush1.bf16.xpose.msra.mxu0 %v182
    %186 = vmatprep.subr.bf16.mxu0 0
    %187 = vmatpush1.bf16.xpose.msra.mxu0 %v179
    %188 = vmatprep.subr.bf16.mxu0 0
    %189 = vmatpush1.bf16.xpose.msra.mxu0 %v176
    %190 = vmatprep.subr.bf16.mxu0 0
    %191 = vmatpush1.bf16.xpose.msra.mxu0 %v173
    %192 = vmatprep.subr.bf16.mxu0 0
    %193 = vmatpush1.bf16.xpose.msra.mxu0 %v170
    %194 = vmatprep.subr.bf16.mxu0 0
    %195 = vmatpush1.bf16.xpose.msra.mxu0 %v167
    %196 = vmatprep.subr.bf16.mxu0 0
    %197 = vmatpush1.bf16.xpose.msra.mxu0 %v164
    %198 = vmatprep.subr.bf16.mxu0 0
    %199 = vmatpush1.bf16.xpose.msra.mxu0 %v161
    %200 = vmatprep.subr.bf16.mxu0 0
    %201 = vmatpush2.bf16.xpose.msra.mxu0 0
    %202 = vmatprep.subr.bf16.mxu0 0
    %203 = vmatpush2.bf16.xpose.msra.mxu0 0
    %204 = vmatprep.subr.bf16.mxu0 0
    %205 = vmatpush2.bf16.xpose.msra.mxu0 0
    %206 = vmatprep.subr.bf16.mxu0 0
    %207 = vmatpush2.bf16.xpose.msra.mxu0 0
    %208 = vmatprep.subr.bf16.mxu0 0
    %209 = vmatpush2.bf16.xpose.msra.mxu0 0
    %210 = vmatprep.subr.bf16.mxu0 0
    %211 = vmatpush2.bf16.xpose.msra.mxu0 0
    %212 = vmatprep.subr.bf16.mxu0 0
    %213 = vmatpush2.bf16.xpose.msra.mxu0 0
    %214 = vmatprep.subr.bf16.mxu0 0
    %215 = vmatpush2.bf16.xpose.msra.mxu0 0
    %216 = vmatprep.mubr.bf16.mxu0 0
    %217 = vmatmul.mubr.bf16.gmra.mxu0 %v137
    %v218 = vpop.f32.mrf.mxu0
    %v219 = vadd.f32 0.0, %v218
    %v220 = vpop.f32.mrf.mxu0
    %v221 = vpop.f32.mrf.mxu0
    %v222 = vadd.f32 0.0, %v221
    %v223 = vpop.f32.mrf.mxu0
    %224 = vmatprep.mubr.bf16.mxu0 0
    %225 = vmatmul.mubr.bf16.gmra.mxu0 %v140
    %v226 = vpop.f32.mrf.mxu0
    %v227 = vadd.f32 0.0, %v226
    %v228 = vpop.f32.mrf.mxu0
    %v229 = vpop.f32.mrf.mxu0
    %v230 = vadd.f32 0.0, %v229
    %v231 = vpop.f32.mrf.mxu0
    %232 = vmatprep.mubr.bf16.mxu0 0
    %233 = vmatmul.mubr.bf16.gmra.mxu0 %v143
    %v234 = vpop.f32.mrf.mxu0
    %v235 = vadd.f32 0.0, %v234
    %v236 = vpop.f32.mrf.mxu0
    %v237 = vpop.f32.mrf.mxu0
    %v238 = vadd.f32 0.0, %v237
    %v239 = vpop.f32.mrf.mxu0
    %240 = vmatprep.mubr.bf16.mxu0 0
    %241 = vmatmul.mubr.bf16.gmra.mxu0 %v146
    %v242 = vpop.f32.mrf.mxu0
    %v243 = vadd.f32 0.0, %v242
    %v244 = vpop.f32.mrf.mxu0
    %v245 = vpop.f32.mrf.mxu0
    %v246 = vadd.f32 0.0, %v245
    %v247 = vpop.f32.mrf.mxu0
    %248 = vmatprep.mubr.bf16.mxu0 0
    %249 = vmatmul.mubr.bf16.gmra.mxu0 %v149
    %v250 = vpop.f32.mrf.mxu0
    %v251 = vadd.f32 0.0, %v250
    %v252 = vpop.f32.mrf.mxu0
    %v253 = vpop.f32.mrf.mxu0
    %v254 = vadd.f32 0.0, %v253
    %v255 = vpop.f32.mrf.mxu0
    %256 = vmatprep.mubr.bf16.mxu0 0
    %257 = vmatmul.mubr.bf16.gmra.mxu0 %v152
    %v258 = vpop.f32.mrf.mxu0
    %v259 = vadd.f32 0.0, %v258
    %v260 = vpop.f32.mrf.mxu0
    %v261 = vpop.f32.mrf.mxu0
    %v262 = vadd.f32 0.0, %v261
    %v263 = vpop.f32.mrf.mxu0
    %264 = vmatprep.mubr.bf16.mxu0 0
    %265 = vmatmul.mubr.bf16.gmra.mxu0 %v155
    %v266 = vpop.f32.mrf.mxu0
    %v267 = vadd.f32 0.0, %v266
    %v268 = vpop.f32.mrf.mxu0
    %v269 = vpop.f32.mrf.mxu0
    %v270 = vadd.f32 0.0, %v269
    %v271 = vpop.f32.mrf.mxu0
    %272 = vmatprep.mubr.bf16.mxu0 0
    %273 = vmatmul.mubr.bf16.gmra.mxu0 %v158
    %v274 = vpop.f32.mrf.mxu0
    %v275 = vadd.f32 0.0, %v274
    %v276 = vpop.f32.mrf.mxu0
    %v277 = vpop.f32.mrf.mxu0
    %v278 = vadd.f32 0.0, %v277
    %v279 = vpop.f32.mrf.mxu0
    %280 = vdwg.mxu0
    %s281 = smul.u32 0, 128
    %v282 = vlaneseq
    %v283 = vshrl.u32 %v282, 7
    %v284 = vadd.s32 %v283, 8
    %v285 = vadd.s32 %v283, 16
    %v286 = vadd.s32 %v283, 24
    %v287 = vadd.s32 %v283, 32
    %v288 = vadd.s32 %v283, 40
    %v289 = vadd.s32 %v283, 48
    %v290 = vadd.s32 %v283, 56
    %v291 = vadd.s32 %v283, 64
    %v292 = vadd.s32 %v283, 72
    %v293 = vadd.s32 %v283, 80
    %v294 = vadd.s32 %v283, 88
    %v295 = vadd.s32 %v283, 96
    %v296 = vadd.s32 %v283, 104
    %v297 = vadd.s32 %v283, 112
    %v298 = vadd.s32 %v283, 120
    %v299 = vstv %s281
    %v300 = vadd.s32 %v299, %v283
    %v301 = vadd.s32 %v299, %v284
    %v302 = vadd.s32 %v299, %v285
    %v303 = vadd.s32 %v299, %v286
    %v304 = vadd.s32 %v299, %v287
    %v305 = vadd.s32 %v299, %v288
    %v306 = vadd.s32 %v299, %v289
    %v307 = vadd.s32 %v299, %v290
    %v308 = vadd.s32 %v299, %v291
    %v309 = vadd.s32 %v299, %v292
    %v310 = vadd.s32 %v299, %v293
    %v311 = vadd.s32 %v299, %v294
    %v312 = vadd.s32 %v299, %v295
    %v313 = vadd.s32 %v299, %v296
    %v314 = vadd.s32 %v299, %v297
    %v315 = vadd.s32 %v299, %v298
    %v316 = vlaneseq
    %v317 = vand.u32 %v316, 127
    %vm318 = vcmp.eq.s32.totalorder %v300, %v317
    %vm319 = vcmp.eq.s32.totalorder %v301, %v317
    %vm320 = vcmp.eq.s32.totalorder %v302, %v317
    %vm321 = vcmp.eq.s32.totalorder %v303, %v317
    %vm322 = vcmp.eq.s32.totalorder %v304, %v317
    %vm323 = vcmp.eq.s32.totalorder %v305, %v317
    %vm324 = vcmp.eq.s32.totalorder %v306, %v317
    %vm325 = vcmp.eq.s32.totalorder %v307, %v317
    %vm326 = vcmp.eq.s32.totalorder %v308, %v317
    %vm327 = vcmp.eq.s32.totalorder %v309, %v317
    %vm328 = vcmp.eq.s32.totalorder %v310, %v317
    %vm329 = vcmp.eq.s32.totalorder %v311, %v317
    %vm330 = vcmp.eq.s32.totalorder %v312, %v317
    %vm331 = vcmp.eq.s32.totalorder %v313, %v317
    %vm332 = vcmp.eq.s32.totalorder %v314, %v317
    %vm333 = vcmp.eq.s32.totalorder %v315, %v317
    %v334 = vsel %vm318, %v219, 0.0
    %v335 = vsel %vm319, %v222, 0.0
    %v336 = vsel %vm320, %v227, 0.0
    %v337 = vsel %vm321, %v230, 0.0
    %v338 = vsel %vm322, %v235, 0.0
    %v339 = vsel %vm323, %v238, 0.0
    %v340 = vsel %vm324, %v243, 0.0
    %v341 = vsel %vm325, %v246, 0.0
    %v342 = vsel %vm326, %v251, 0.0
    %v343 = vsel %vm327, %v254, 0.0
    %v344 = vsel %vm328, %v259, 0.0
    %v345 = vsel %vm329, %v262, 0.0
    %v346 = vsel %vm330, %v267, 0.0
    %v347 = vsel %vm331, %v270, 0.0
    %v348 = vsel %vm332, %v275, 0.0
    %v349 = vsel %vm333, %v278, 0.0
    %350 = vadd.xlane.f32.xlu0 %v334
    %v351 = vpop.xlane.xlu0 %350
    %352 = vadd.xlane.f32.xlu0 %v335
    %v353 = vpop.xlane.xlu0 %352
    %354 = vadd.xlane.f32.xlu0 %v336
    %v355 = vpop.xlane.xlu0 %354
    %356 = vadd.xlane.f32.xlu0 %v337
    %v357 = vpop.xlane.xlu0 %356
    %358 = vadd.xlane.f32.xlu0 %v338
    %v359 = vpop.xlane.xlu0 %358
    %360 = vadd.xlane.f32.xlu0 %v339
    %v361 = vpop.xlane.xlu0 %360
    %362 = vadd.xlane.f32.xlu0 %v340
    %v363 = vpop.xlane.xlu0 %362
    %364 = vadd.xlane.f32.xlu0 %v341
    %v365 = vpop.xlane.xlu0 %364
    %366 = vadd.xlane.f32.xlu0 %v342
    %v367 = vpop.xlane.xlu0 %366
    %368 = vadd.xlane.f32.xlu0 %v343
    %v369 = vpop.xlane.xlu0 %368
    %370 = vadd.xlane.f32.xlu0 %v344
    %v371 = vpop.xlane.xlu0 %370
    %372 = vadd.xlane.f32.xlu0 %v345
    %v373 = vpop.xlane.xlu0 %372
    %374 = vadd.xlane.f32.xlu0 %v346
    %v375 = vpop.xlane.xlu0 %374
    %376 = vadd.xlane.f32.xlu0 %v347
    %v377 = vpop.xlane.xlu0 %376
    %378 = vadd.xlane.f32.xlu0 %v348
    %v379 = vpop.xlane.xlu0 %378
    %380 = vadd.xlane.f32.xlu0 %v349
    %v381 = vpop.xlane.xlu0 %380
    %v382 = vadd.f32 %v334, %v335
    %v383 = vadd.f32 %v382, %v336
    %v384 = vadd.f32 %v383, %v337
    %v385 = vadd.f32 %v384, %v338
    %v386 = vadd.f32 %v385, %v339
    %v387 = vadd.f32 %v386, %v340
    %v388 = vadd.f32 %v387, %v341
    %v389 = vadd.f32 %v388, %v342
    %v390 = vadd.f32 %v389, %v343
    %v391 = vadd.f32 %v390, %v344
    %v392 = vadd.f32 %v391, %v345
    %v393 = vadd.f32 %v392, %v346
    %v394 = vadd.f32 %v393, %v347
    %v395 = vadd.f32 %v394, %v348
    %v396 = vadd.f32 %v395, %v349
    %v397 = vrot.slane %v396, 4
    %v398 = vadd.f32 %v396, %v397
    %v399 = vrot.slane %v398, 2
    %v400 = vadd.f32 %v398, %v399
    %v401 = vrot.slane %v400, 1
    %v402 = vadd.f32 %v400, %v401
    %v403 = vld [vmem:[%s2] sm:$0xff]
    %v404 = vld [vmem:[%s2 + $0x8] sm:$0xff]
    %v405 = vld [vmem:[%s2 + $0x10] sm:$0xff]
    %v406 = vld [vmem:[%s2 + $0x18] sm:$0xff]
    %v407 = vld [vmem:[%s2 + $0x20] sm:$0xff]
    %v408 = vld [vmem:[%s2 + $0x28] sm:$0xff]
    %v409 = vld [vmem:[%s2 + $0x30] sm:$0xff]
    %v410 = vld [vmem:[%s2 + $0x38] sm:$0xff]
    %v411 = vld [vmem:[%s2 + $0x40] sm:$0xff]
    %v412 = vld [vmem:[%s2 + $0x48] sm:$0xff]
    %v413 = vld [vmem:[%s2 + $0x50] sm:$0xff]
    %v414 = vld [vmem:[%s2 + $0x58] sm:$0xff]
    %v415 = vld [vmem:[%s2 + $0x60] sm:$0xff]
    %v416 = vld [vmem:[%s2 + $0x68] sm:$0xff]
    %v417 = vld [vmem:[%s2 + $0x70] sm:$0xff]
    %v418 = vld [vmem:[%s2 + $0x78] sm:$0xff]
    %v419 = vld [vmem:[%s3] sm:$0x1]
    %420 = vset.pattern.permute.xlu0 0
    %421 = vperm.xlu0 %420, %v403
    %v422 = vpop.permute.xlu0 %421
    %423 = vset.pattern.permute.xlu0 0
    %424 = vperm.xlu0 %423, %v404
    %v425 = vpop.permute.xlu0 %424
    %426 = vset.pattern.permute.xlu0 0
    %427 = vperm.xlu0 %426, %v405
    %v428 = vpop.permute.xlu0 %427
    %429 = vset.pattern.permute.xlu0 0
    %430 = vperm.xlu0 %429, %v406
    %v431 = vpop.permute.xlu0 %430
    %432 = vset.pattern.permute.xlu0 0
    %433 = vperm.xlu0 %432, %v407
    %v434 = vpop.permute.xlu0 %433
    %435 = vset.pattern.permute.xlu0 0
    %436 = vperm.xlu0 %435, %v408
    %v437 = vpop.permute.xlu0 %436
    %438 = vset.pattern.permute.xlu0 0
    %439 = vperm.xlu0 %438, %v409
    %v440 = vpop.permute.xlu0 %439
    %441 = vset.pattern.permute.xlu0 0
    %442 = vperm.xlu0 %441, %v410
    %v443 = vpop.permute.xlu0 %442
    %444 = vset.pattern.permute.xlu0 0
    %445 = vperm.xlu0 %444, %v411
    %v446 = vpop.permute.xlu0 %445
    %447 = vset.pattern.permute.xlu0 0
    %448 = vperm.xlu0 %447, %v412
    %v449 = vpop.permute.xlu0 %448
    %450 = vset.pattern.permute.xlu0 0
    %451 = vperm.xlu0 %450, %v413
    %v452 = vpop.permute.xlu0 %451
    %453 = vset.pattern.permute.xlu0 0
    %454 = vperm.xlu0 %453, %v414
    %v455 = vpop.permute.xlu0 %454
    %456 = vset.pattern.permute.xlu0 0
    %457 = vperm.xlu0 %456, %v415
    %v458 = vpop.permute.xlu0 %457
    %459 = vset.pattern.permute.xlu0 0
    %460 = vperm.xlu0 %459, %v416
    %v461 = vpop.permute.xlu0 %460
    %462 = vset.pattern.permute.xlu0 0
    %463 = vperm.xlu0 %462, %v417
    %v464 = vpop.permute.xlu0 %463
    %465 = vset.pattern.permute.xlu0 0
    %466 = vperm.xlu0 %465, %v418
    %v467 = vpop.permute.xlu0 %466
    %v468 = vlaneseq
    %v469 = vshrl.u32 %v468, 7
    %v470 = vsub.s32 0, %v469
    %v471 = vrot.slane %v419, %v470
    %vm472 = vcmp.ne.s32.totalorder %v422, %v471
    %vm473 = vcmp.ne.s32.totalorder %v425, %v471
    %vm474 = vcmp.ne.s32.totalorder %v428, %v471
    %vm475 = vcmp.ne.s32.totalorder %v431, %v471
    %vm476 = vcmp.ne.s32.totalorder %v434, %v471
    %vm477 = vcmp.ne.s32.totalorder %v437, %v471
    %vm478 = vcmp.ne.s32.totalorder %v440, %v471
    %vm479 = vcmp.ne.s32.totalorder %v443, %v471
    %vm480 = vcmp.ne.s32.totalorder %v446, %v471
    %vm481 = vcmp.ne.s32.totalorder %v449, %v471
    %vm482 = vcmp.ne.s32.totalorder %v452, %v471
    %vm483 = vcmp.ne.s32.totalorder %v455, %v471
    %vm484 = vcmp.ne.s32.totalorder %v458, %v471
    %vm485 = vcmp.ne.s32.totalorder %v461, %v471
    %vm486 = vcmp.ne.s32.totalorder %v464, %v471
    %vm487 = vcmp.ne.s32.totalorder %v467, %v471
    %vm488 = vcmp.lt.s32.totalorder %v300, 8
    %vm489 = vcmp.lt.s32.totalorder %v301, 8
    %vm490 = vcmp.lt.s32.totalorder %v302, 8
    %vm491 = vcmp.lt.s32.totalorder %v303, 8
    %vm492 = vcmp.lt.s32.totalorder %v304, 8
    %vm493 = vcmp.lt.s32.totalorder %v305, 8
    %vm494 = vcmp.lt.s32.totalorder %v306, 8
    %vm495 = vcmp.lt.s32.totalorder %v307, 8
    %vm496 = vcmp.lt.s32.totalorder %v308, 8
    %vm497 = vcmp.lt.s32.totalorder %v309, 8
    %vm498 = vcmp.lt.s32.totalorder %v310, 8
    %vm499 = vcmp.lt.s32.totalorder %v311, 8
    %vm500 = vcmp.lt.s32.totalorder %v312, 8
    %vm501 = vcmp.lt.s32.totalorder %v313, 8
    %vm502 = vcmp.lt.s32.totalorder %v314, 8
    %vm503 = vcmp.lt.s32.totalorder %v315, 8
    %v504 = vsel %vm488, 1, 0
    %v505 = vsel %vm489, 1, 0
    %v506 = vsel %vm490, 1, 0
    %v507 = vsel %vm491, 1, 0
    %v508 = vsel %vm492, 1, 0
    %v509 = vsel %vm493, 1, 0
    %v510 = vsel %vm494, 1, 0
    %v511 = vsel %vm495, 1, 0
    %v512 = vsel %vm496, 1, 0
    %v513 = vsel %vm497, 1, 0
    %v514 = vsel %vm498, 1, 0
    %v515 = vsel %vm499, 1, 0
    %v516 = vsel %vm500, 1, 0
    %v517 = vsel %vm501, 1, 0
    %v518 = vsel %vm502, 1, 0
    %v519 = vsel %vm503, 1, 0
    %vm520 = vcmp.eq.s32.totalorder %v504, 1
    %vm521 = vcmp.eq.s32.totalorder %v505, 1
    %vm522 = vcmp.eq.s32.totalorder %v506, 1
    %vm523 = vcmp.eq.s32.totalorder %v507, 1
    %vm524 = vcmp.eq.s32.totalorder %v508, 1
    %vm525 = vcmp.eq.s32.totalorder %v509, 1
    %vm526 = vcmp.eq.s32.totalorder %v510, 1
    %vm527 = vcmp.eq.s32.totalorder %v511, 1
    %vm528 = vcmp.eq.s32.totalorder %v512, 1
    %vm529 = vcmp.eq.s32.totalorder %v513, 1
    %vm530 = vcmp.eq.s32.totalorder %v514, 1
    %vm531 = vcmp.eq.s32.totalorder %v515, 1
    %vm532 = vcmp.eq.s32.totalorder %v516, 1
    %vm533 = vcmp.eq.s32.totalorder %v517, 1
    %vm534 = vcmp.eq.s32.totalorder %v518, 1
    %vm535 = vcmp.eq.s32.totalorder %v519, 1
    %vm536 = vmand %vm472, %vm520
    %vm537 = vmand %vm473, %vm521
    %vm538 = vmand %vm474, %vm522
    %vm539 = vmand %vm475, %vm523
    %vm540 = vmand %vm476, %vm524
    %vm541 = vmand %vm477, %vm525
    %vm542 = vmand %vm478, %vm526
    %vm543 = vmand %vm479, %vm527
    %vm544 = vmand %vm480, %vm528
    %vm545 = vmand %vm481, %vm529
    %vm546 = vmand %vm482, %vm530
    %vm547 = vmand %vm483, %vm531
    %vm548 = vmand %vm484, %vm532
    %vm549 = vmand %vm485, %vm533
    %vm550 = vmand %vm486, %vm534
    %vm551 = vmand %vm487, %vm535
    %vm552 = vcmp.lt.s32.totalorder %v317, 8
    %v553 = vsel %vm552, 1, 0
    %vm554 = vcmp.eq.s32.totalorder %v553, 1
    %vm555 = vmand %vm536, %vm554
    %vm556 = vmand %vm537, %vm554
    %vm557 = vmand %vm538, %vm554
    %vm558 = vmand %vm539, %vm554
    %vm559 = vmand %vm540, %vm554
    %vm560 = vmand %vm541, %vm554
    %vm561 = vmand %vm542, %vm554
    %vm562 = vmand %vm543, %vm554
    %vm563 = vmand %vm544, %vm554
    %vm564 = vmand %vm545, %vm554
    %vm565 = vmand %vm546, %vm554
    %vm566 = vmand %vm547, %vm554
    %vm567 = vmand %vm548, %vm554
    %vm568 = vmand %vm549, %vm554
    %vm569 = vmand %vm550, %vm554
    %vm570 = vmand %vm551, %vm554
    %v571 = vsel %vm555, %v219, -inf
    %v572 = vsel %vm556, %v222, -inf
    %v573 = vsel %vm557, %v227, -inf
    %v574 = vsel %vm558, %v230, -inf
    %v575 = vsel %vm559, %v235, -inf
    %v576 = vsel %vm560, %v238, -inf
    %v577 = vsel %vm561, %v243, -inf
    %v578 = vsel %vm562, %v246, -inf
    %v579 = vsel %vm563, %v251, -inf
    %v580 = vsel %vm564, %v254, -inf
    %v581 = vsel %vm565, %v259, -inf
    %v582 = vsel %vm566, %v262, -inf
    %v583 = vsel %vm567, %v267, -inf
    %v584 = vsel %vm568, %v270, -inf
    %v585 = vsel %vm569, %v275, -inf
    %v586 = vsel %vm570, %v278, -inf
    %587 = vmax.xlane.f32.xlu0 %v571
    %v588 = vpop.xlane.xlu0 %587
    %589 = vmax.xlane.f32.xlu0 %v572
    %v590 = vpop.xlane.xlu0 %589
    %591 = vmax.xlane.f32.xlu0 %v573
    %v592 = vpop.xlane.xlu0 %591
    %593 = vmax.xlane.f32.xlu0 %v574
    %v594 = vpop.xlane.xlu0 %593
    %595 = vmax.xlane.f32.xlu0 %v575
    %v596 = vpop.xlane.xlu0 %595
    %597 = vmax.xlane.f32.xlu0 %v576
    %v598 = vpop.xlane.xlu0 %597
    %599 = vmax.xlane.f32.xlu0 %v577
    %v600 = vpop.xlane.xlu0 %599
    %601 = vmax.xlane.f32.xlu0 %v578
    %v602 = vpop.xlane.xlu0 %601
    %603 = vmax.xlane.f32.xlu0 %v579
    %v604 = vpop.xlane.xlu0 %603
    %605 = vmax.xlane.f32.xlu0 %v580
    %v606 = vpop.xlane.xlu0 %605
    %607 = vmax.xlane.f32.xlu0 %v581
    %v608 = vpop.xlane.xlu0 %607
    %609 = vmax.xlane.f32.xlu0 %v582
    %v610 = vpop.xlane.xlu0 %609
    %611 = vmax.xlane.f32.xlu0 %v583
    %v612 = vpop.xlane.xlu0 %611
    %613 = vmax.xlane.f32.xlu0 %v584
    %v614 = vpop.xlane.xlu0 %613
    %615 = vmax.xlane.f32.xlu0 %v585
    %v616 = vpop.xlane.xlu0 %615
    %617 = vmax.xlane.f32.xlu0 %v586
    %v618 = vpop.xlane.xlu0 %617
    %v619 = vmax.f32 %v571, %v575
    %v620 = vmax.f32 %v572, %v576
    %v621 = vmax.f32 %v573, %v577
    %v622 = vmax.f32 %v574, %v578
    %v623 = vmax.f32 %v619, %v579
    %v624 = vmax.f32 %v620, %v580
    %v625 = vmax.f32 %v621, %v581
    %v626 = vmax.f32 %v622, %v582
    %v627 = vmax.f32 %v623, %v583
    %v628 = vmax.f32 %v624, %v584
    %v629 = vmax.f32 %v625, %v585
    %v630 = vmax.f32 %v626, %v586
    %v631 = vmax.f32 %v627, %v628
    %v632 = vmax.f32 %v629, %v630
    %v633 = vmax.f32 %v631, %v632
    %v634 = vrot.slane %v633, 4
    %v635 = vmax.f32 %v633, %v634
    %v636 = vrot.slane %v635, 2
    %v637 = vmax.f32 %v635, %v636
    %v638 = vrot.slane %v637, 1
    %v639 = vmax.f32 %v637, %v638
    %v640 = vadd.f32 %v588, 0.2
    %v641 = vadd.f32 %v590, 0.2
    %v642 = vadd.f32 %v592, 0.2
    %v643 = vadd.f32 %v594, 0.2
    %v644 = vadd.f32 %v596, 0.2
    %v645 = vadd.f32 %v598, 0.2
    %v646 = vadd.f32 %v600, 0.2
    %v647 = vadd.f32 %v602, 0.2
    %v648 = vadd.f32 %v604, 0.2
    %v649 = vadd.f32 %v606, 0.2
    %v650 = vadd.f32 %v608, 0.2
    %v651 = vadd.f32 %v610, 0.2
    %v652 = vadd.f32 %v612, 0.2
    %v653 = vadd.f32 %v614, 0.2
    %v654 = vadd.f32 %v616, 0.2
    %v655 = vadd.f32 %v618, 0.2
    %v656 = vsub.f32 %v640, %v351
    %v657 = vsub.f32 %v641, %v353
    %v658 = vsub.f32 %v642, %v355
    %v659 = vsub.f32 %v643, %v357
    %v660 = vsub.f32 %v644, %v359
    %v661 = vsub.f32 %v645, %v361
    %v662 = vsub.f32 %v646, %v363
    %v663 = vsub.f32 %v647, %v365
    %v664 = vsub.f32 %v648, %v367
    %v665 = vsub.f32 %v649, %v369
    %v666 = vsub.f32 %v650, %v371
    %v667 = vsub.f32 %v651, %v373
    %v668 = vsub.f32 %v652, %v375
    %v669 = vsub.f32 %v653, %v377
    %v670 = vsub.f32 %v654, %v379
    %v671 = vsub.f32 %v655, %v381
    %v672 = vmax.f32 %v656, 0.0
    %v673 = vmax.f32 %v657, 0.0
    %v674 = vmax.f32 %v658, 0.0
    %v675 = vmax.f32 %v659, 0.0
    %v676 = vmax.f32 %v660, 0.0
    %v677 = vmax.f32 %v661, 0.0
    %v678 = vmax.f32 %v662, 0.0
    %v679 = vmax.f32 %v663, 0.0
    %v680 = vmax.f32 %v664, 0.0
    %v681 = vmax.f32 %v665, 0.0
    %v682 = vmax.f32 %v666, 0.0
    %v683 = vmax.f32 %v667, 0.0
    %v684 = vmax.f32 %v668, 0.0
    %v685 = vmax.f32 %v669, 0.0
    %v686 = vmax.f32 %v670, 0.0
    %v687 = vmax.f32 %v671, 0.0
    %vm688 = vcmask 7168
    %689 = vst.msk [vmem:[%s4] sm:$0xff] %vm688, %v672
    %690 = vst.msk [vmem:[%s4 + $0x8] sm:$0xff] %vm688, %v673
    %691 = vst.msk [vmem:[%s4 + $0x10] sm:$0xff] %vm688, %v674
    %692 = vst.msk [vmem:[%s4 + $0x18] sm:$0xff] %vm688, %v675
    %693 = vst.msk [vmem:[%s4 + $0x20] sm:$0xff] %vm688, %v676
    %694 = vst.msk [vmem:[%s4 + $0x28] sm:$0xff] %vm688, %v677
    %695 = vst.msk [vmem:[%s4 + $0x30] sm:$0xff] %vm688, %v678
    %696 = vst.msk [vmem:[%s4 + $0x38] sm:$0xff] %vm688, %v679
    %697 = vst.msk [vmem:[%s4 + $0x40] sm:$0xff] %vm688, %v680
    %698 = vst.msk [vmem:[%s4 + $0x48] sm:$0xff] %vm688, %v681
    %699 = vst.msk [vmem:[%s4 + $0x50] sm:$0xff] %vm688, %v682
    %700 = vst.msk [vmem:[%s4 + $0x58] sm:$0xff] %vm688, %v683
    %701 = vst.msk [vmem:[%s4 + $0x60] sm:$0xff] %vm688, %v684
    %702 = vst.msk [vmem:[%s4 + $0x68] sm:$0xff] %vm688, %v685
    %703 = vst.msk [vmem:[%s4 + $0x70] sm:$0xff] %vm688, %v686
    %704 = vst.msk [vmem:[%s4 + $0x78] sm:$0xff] %vm688, %v687
    %705 = vst [vmem:[#allocation2] sm:$0xff] %v402
    %706 = vst [vmem:[#allocation4] sm:$0xff] %v639
    // Predicated region
    $region18: #{tpu_custom_call.1} parent=1 // pred_check
      _
    $region19: #{tpu_custom_call.1} parent=1 // pred_check_branch
      %708 = sbr.rel (0) target = $region21
    $region20: #{tpu_custom_call.1} parent=1 // pred_region
      _
    $region21: #{tpu_custom_call.1} parent=1 // pred_fallthru
      _
    // Predicated region
    $region22: #{tpu_custom_call.1} parent=1 // pred_check
      _
    $region23: #{tpu_custom_call.1} parent=1 // pred_check_branch
      %710 = sbr.rel (0) target = $region25
    $region24: #{tpu_custom_call.1} parent=1 // pred_region
      %s712 = ssub.s32 128, 128
      %713 = vsyncadd [#allocation3], %s712
      %s715 = sshll.u32 [#allocation2], 4
      %s716 = int_to_ptr.vmem [resolvable:$true] %s715
      %718 = dma.vmem_to_hbm [thread:$0]  %s716, 128, %s5, [#allocation3]
    $region25: #{tpu_custom_call.1} parent=1 // pred_fallthru
      _
    // Predicated region
    $region26: #{tpu_custom_call.1} parent=1 // pred_check
      _
    $region27: #{tpu_custom_call.1} parent=1 // pred_check_branch
      %720 = sbr.rel (0) target = $region29
    $region28: #{tpu_custom_call.1} parent=1 // pred_region
      %s722 = ssub.s32 128, 128
      %723 = vsyncadd [#allocation5], %s722
      %s725 = sshll.u32 [#allocation4], 4
      %s726 = int_to_ptr.vmem [resolvable:$true] %s725
      %728 = dma.vmem_to_hbm [thread:$0]  %s726, 128, %s6, [#allocation5]
    $region29: #{tpu_custom_call.1} parent=1 // pred_fallthru
      _
    // Predicated region
    $region30: #{tpu_custom_call.1} parent=1 // pred_check
      _
    $region31: #{tpu_custom_call.1} parent=1 // pred_check_branch
      %730 = sbr.rel (0) target = $region33
    $region32: #{tpu_custom_call.1} parent=1 // pred_region
      _
    $region33: #{tpu_custom_call.1} parent=1 // pred_fallthru
      _
    // Predicated region
    $region34: #{tpu_custom_call.1} parent=1 // pred_check
      _
    $region35: #{tpu_custom_call.1} parent=1 // pred_check_branch
      %732 = sbr.rel (0) target = $region37
    $region36: #{tpu_custom_call.1} parent=1 // pred_region
      %733 = dma.done [#allocation3], 128
    $region37: #{tpu_custom_call.1} parent=1 // pred_fallthru
      _
    // Predicated region
    $region38: #{tpu_custom_call.1} parent=1 // pred_check
      _
    $region39: #{tpu_custom_call.1} parent=1 // pred_check_branch
      %735 = sbr.rel (0) target = $region41
    $region40: #{tpu_custom_call.1} parent=1 // pred_region
      %736 = dma.done [#allocation5], 128
    $region41: #{tpu_custom_call.1} parent=1 // pred_fallthru
      _
    %737 = vsyncpa [#allocation3], 1
    %738 = vsyncpa [#allocation5], 1

</llo_original>
